<compile_context>
chip_gen: v7x
topology: tpu7x:2x2x1
jax: 0.10.0
libtpu: 0.0.40
codegen_flags: <defaults>
</compile_context>

<pallas_src>
import functools

import jax
import jax.numpy as jnp
from jax import lax
from jax.experimental import pallas as pl
from jax.experimental.pallas import tpu as pltpu

EPS = 1e-12


# ----------------------------------------------------------------------------
# Kernel 1: spectral-norm statistics (tiny, latency-bound).
# Emits inv_sigma (1,1) + updated u, v.  The scaled weight is never written
# back to HBM -- the conv kernel folds inv_sigma into its resident weight.
# TODO(synk): could be folded into the conv pallas_call (pl.when on the first
# tile of each image) to save one launch on v7x, at the cost of redundant
# per-image recompute; kept separate for clarity.
# ----------------------------------------------------------------------------
def _sn_kernel(w_ref, u_ref, v_ref, inv_sig_ref, u_out_ref, v_out_ref, *,
               training, power_iterations):
    w = w_ref[...].astype(jnp.float32)      # (H, K)  = w_bar.view(height, -1)
    u = u_ref[...].astype(jnp.float32)      # (1, H)
    v = v_ref[...].astype(jnp.float32)      # (1, K)

    if training:
        for _ in range(power_iterations):
            # v = l2normalize(W^T u)
            v = jnp.dot(u, w, preferred_element_type=jnp.float32)        # (1, K)
            v = v / (jnp.sqrt(jnp.sum(v * v)) + EPS)
            # u = l2normalize(W v)
            wv = jnp.dot(w, v.T, preferred_element_type=jnp.float32)     # (H, 1)
            u = wv.T / (jnp.sqrt(jnp.sum(wv * wv)) + EPS)

    # sigma = u . (W v)   (same eps-free division as the PyTorch reference)
    wv = jnp.dot(w, v.T, preferred_element_type=jnp.float32)             # (H, 1)
    sigma = jnp.sum(u * wv.T, axis=-1, keepdims=True)                    # (1, 1)

    inv_sig_ref[...] = 1.0 / sigma
    u_out_ref[...] = u.astype(u_out_ref.dtype)
    v_out_ref[...] = v.astype(v_out_ref.dtype)


def spectral_normalize(w_flat, u, v, *, training=True, power_iterations=1):
    """Returns (inv_sigma (1,1) f32, new u (H,), new v (K,))."""
    H, K = w_flat.shape
    vmem = pl.BlockSpec(memory_space=pltpu.MemorySpace.VMEM)
    kern = functools.partial(_sn_kernel, training=training,
                             power_iterations=power_iterations)
    inv_sigma, u_new, v_new = pl.pallas_call(
        kern,
        out_shape=(jax.ShapeDtypeStruct((1, 1), jnp.float32),
                   jax.ShapeDtypeStruct((1, H), u.dtype),
                   jax.ShapeDtypeStruct((1, K), v.dtype)),
        in_specs=[vmem, vmem, vmem],
        out_specs=(vmem, vmem, vmem),
    )(w_flat, u.reshape(1, H), v.reshape(1, K))
    return inv_sigma, u_new.reshape(H), v_new.reshape(K)


# ----------------------------------------------------------------------------
# Kernel 2: 3x3 SAME conv with in-kernel halo construction, fused 1/sigma
#           scaling, lane-dense (Co, tile_s) output tiles.
#
# Scratch layout xs_ref: (3*C, padl + HW + padl), rows grouped by kx:
#   rows [0:C)    : "left neighbour"  plane  -> value x[s-1], zero where col(s)==0
#   rows [C:2C)   : centre plane               value x[s]
#   rows [2C:3C)  : "right neighbour" plane -> value x[s+1], zero where col(s)==W-1
# with a zero halo of `padl >= W` lanes on both sides so ky = 0/2 reads of the
# top / bottom image rows land in zeros (no row masking needed at all).
# ----------------------------------------------------------------------------
def _conv3x3_kernel(x_ref, w_ref, b_ref, m_ref, inv_sig_ref, o_ref, xs_ref, *,
                    C, W, HW, Co, tile_s, padl, lane_aligned):
    i = pl.program_id(1)                      # spatial tile index

    # ---- once-per-image fill of the dx-pre-shifted, zero-haloed scratch ----
    @pl.when(i == 0)
    def _fill():
        xv = x_ref[...]                                       # (C, HW)
        halo = jnp.zeros((3 * C, padl), xv.dtype)
        xs_ref[:, 0:padl] = halo                              # left halo
        xs_ref[:, padl + HW:padl + HW + padl] = halo          # right halo
        # kx = 0 plane: x[s-1], destination mask kills column-0 wrap.
        xs_ref[0:C, padl:padl + HW] = jnp.roll(xv, 1, axis=-1) * m_ref[0:1, :]
        # kx = 1 plane: centre (no mask).
        xs_ref[C:2 * C, padl:padl + HW] = xv
        # kx = 2 plane: x[s+1], destination mask kills column-(W-1) wrap.
        xs_ref[2 * C:3 * C, padl:padl + HW] = jnp.roll(xv, -1, axis=-1) * m_ref[1:2, :]

    # ---- per-tile compute: fold 1/sigma into the tiny resident weight ------
    inv_sig = inv_sig_ref[0, 0]                               # SMEM scalar
    w_scaled = (w_ref[...].astype(jnp.float32) * inv_sig).astype(w_ref.dtype)

    base = padl + i * tile_s
    acc = jnp.zeros((Co, tile_s), jnp.float32)
    for ky in range(3):
        off = base + (ky - 1) * W
        if lane_aligned[ky]:
            off = pl.multiple_of(off, 128)
        slab = xs_ref[:, pl.ds(off, tile_s)]                  # (3C, tile_s), rows (kx, ci)
        wk = w_scaled[:, ky * 3 * C:(ky + 1) * 3 * C]         # (Co, 3C)
        acc = acc + lax.dot_general(wk, slab, (((1,), (0,)), ((), ())),
                                    preferred_element_type=jnp.float32)

    o_ref[...] = (acc + b_ref[...]).astype(o_ref.dtype)


def _pick_tile_s(HW, requested, cap=1024):
    """Largest 128-multiple divisor of HW <= cap; honours a valid request;
    falls back to a single full-width tile for awkward H*W."""
    if requested is not None and 0 < requested <= HW and HW % requested == 0 \
            and (requested % 128 == 0 or requested == HW):
        return requested
    best = None
    d = 128
    while d <= min(cap, HW):
        if HW % d == 0:
            best = d
        d += 128
    return best if best is not None else HW


def conv2d_3x3_same_sn(x, w_bar, bias, inv_sigma, *,
                       compute_dtype=jnp.bfloat16, tile_s=None):
    """3x3 / stride-1 / pad-1 conv of NCHW `x` with OIHW `w_bar` scaled by
    inv_sigma, plus bias.  Returns NCHW output (dtype of x)."""
    N, C, H, W = x.shape
    Co = w_bar.shape[0]
    HW = H * W
    K = 9 * C

    tile_s = _pick_tile_s(HW, tile_s)
    n_tiles = HW // tile_s
    padl = ((W + 127) // 128) * 128            # halo >= W, lane-aligned
    PHW = HW + 2 * padl
    # TODO(synk): for images whose 3*C*(HW+2*padl) scratch exceeds the v7x
    # 64 MiB VMEM, switch to halo-tiled manual DMA of x instead of a
    # whole-image resident scratch.

    # Which of the three ky lane windows are guaranteed 128-aligned.
    tiles_aligned = (tile_s % 128 == 0) or (n_tiles == 1)
    lane_aligned = tuple(tiles_aligned and (ky == 1 or W % 128 == 0)
                         for ky in range(3))

    # Layout prep: NO padding / NO transpose of x (reshape is free).
    xf = x.reshape(N, C, HW).astype(compute_dtype)
    # Weight rearranged (Co, ky, kx, ci) so each ky slice is (kx, ci)-contiguous.
    w_k = jnp.transpose(w_bar, (0, 2, 3, 1)).reshape(Co, K).astype(compute_dtype)
    bias2 = bias.reshape(Co, 1).astype(jnp.float32)
    # Column-wrap masks, used only in the once-per-image fill.
    col = jnp.arange(HW, dtype=jnp.int32) % W
    masks = jnp.stack([col != 0, col != (W - 1)]).astype(compute_dtype)  # (2, HW)

    kern = functools.partial(_conv3x3_kernel, C=C, W=W, HW=HW, Co=Co,
                             tile_s=tile_s, padl=padl, lane_aligned=lane_aligned)

    esz = jnp.dtype(compute_dtype).itemsize
    osz = jnp.dtype(x.dtype).itemsize
    vmem_bytes = (3 * C * PHW * esz            # resident scratch
                  + 2 * C * HW * esz           # image block (double-buffered)
                  + 2 * 2 * HW * esz           # masks
                  + 2 * Co * tile_s * osz      # output block (double-buffered)
                  + 2 * (Co * 128 * esz + Co * 4)
                  + (4 << 20))                 # headroom
    vmem_bytes = int(min(max(vmem_bytes, 32 << 20), 128 << 20))

    cost = pl.CostEstimate(
        flops=2 * N * HW * Co * C * 9,
        transcendentals=0,
        bytes_accessed=int(N * C * HW * esz + N * Co * HW * osz
                           + Co * K * esz + 2 * HW * esz))

    out = pl.pallas_call(
        kern,
        grid=(N, n_tiles),
        out_shape=jax.ShapeDtypeStruct((N, Co, HW), x.dtype),
        in_specs=[
            pl.BlockSpec((None, C, HW), lambda n, i: (n, 0, 0)),   # image, per n
            pl.BlockSpec((Co, K), lambda n, i: (0, 0)),            # resident weight
            pl.BlockSpec((Co, 1), lambda n, i: (0, 0)),            # bias
            pl.BlockSpec((2, HW), lambda n, i: (0, 0)),            # column masks
            pl.BlockSpec(memory_space=pltpu.MemorySpace.SMEM),     # inv_sigma (1,1)
        ],
        out_specs=pl.BlockSpec((None, Co, tile_s), lambda n, i: (n, 0, i)),
        scratch_shapes=[pltpu.VMEM((3 * C, PHW), compute_dtype)],
        compiler_params=pltpu.CompilerParams(
            # Spatial axis must be "arbitrary": the per-image scratch fill at
            # i == 0 requires in-order visitation of the tiles of one image.
            # Batch axis stays "parallel" for megacore sharding.
            dimension_semantics=("parallel", "arbitrary"),
            vmem_limit_bytes=vmem_bytes),
        cost_estimate=cost,
    )(xf, w_k, bias2, masks, inv_sigma)

    # (N, Co, HW) is already channel-major: reshape to NCHW with no transpose.
    return out.reshape(N, Co, H, W)


# ----------------------------------------------------------------------------
# Full SpectralNorm(Conv2d) forward
# ----------------------------------------------------------------------------
def spectral_norm_conv_forward(x, w_bar, bias, u, v, *, training=True,
                               power_iterations=1,
                               compute_dtype=jnp.bfloat16, tile_s=None):
    Co = w_bar.shape[0]
    w_flat = w_bar.reshape(Co, -1)                  # PyTorch view(height, -1) order
    inv_sigma, u_new, v_new = spectral_normalize(
        w_flat, u, v, training=training, power_iterations=power_iterations)
    y = conv2d_3x3_same_sn(x, w_bar, bias, inv_sigma,
                           compute_dtype=compute_dtype, tile_s=tile_s)
    return y, u_new, v_new


# ----------------------------------------------------------------------------
# Pure-JAX reference (for self-check)
# ----------------------------------------------------------------------------
def ref_forward(x, w_bar, bias, u, v, training=True, power_iterations=1):
    Co = w_bar.shape[0]
    wm = w_bar.reshape(Co, -1)
    if training:
        for _ in range(power_iterations):
            v = wm.T @ u
            v = v / (jnp.linalg.norm(v) + EPS)
            u = wm @ v
            u = u / (jnp.linalg.norm(u) + EPS)
    sigma = u @ (wm @ v)
    w = w_bar / sigma
    out = lax.conv_general_dilated(
        x, w, window_strides=(1, 1), padding='SAME',
        dimension_numbers=('NCHW', 'OIHW', 'NCHW'))
    return out + bias.reshape(1, -1, 1, 1), u, v


if __name__ == "__main__":
    key = jax.random.PRNGKey(0)
    k_w, k_b, k_u, k_v, k_x = jax.random.split(key, 5)

    N, C_in, Hs, Ws = 2, 4, 16, 16
    C_out, kh, kw = 8, 3, 3
    width = C_in * kh * kw

    # Deterministic params (emulating Conv2d weight/bias + SpectralNorm u, v).
    w_bar = jax.random.normal(k_w, (C_out, C_in, kh, kw), jnp.float32) * 0.1
    bias = jax.random.normal(k_b, (C_out,), jnp.float32) * 0.1
    u0 = jax.random.normal(k_u, (C_out,), jnp.float32)
    v0 = jax.random.normal(k_v, (width,), jnp.float32)
    u0 = u0 / (jnp.linalg.norm(u0) + EPS)
    v0 = v0 / (jnp.linalg.norm(v0) + EPS)
    x = jax.random.normal(k_x, (N, C_in, Hs, Ws), jnp.float32)

    # tile_s=128 so the small demo exercises a real (2, 2) grid; the auto pick
    # (<=1024, 128-multiple) is used on production shapes.
    y, u_new, v_new = spectral_norm_conv_forward(
        x, w_bar, bias, u0, v0, training=True, power_iterations=1,
        compute_dtype=jnp.float32, tile_s=128)
    jax.block_until_ready(y)

    y_ref, u_ref, v_ref = ref_forward(x, w_bar, bias, u0, v0, training=True)
    assert y.shape == (N, C_out, Hs, Ws)
    assert jnp.allclose(y, y_ref, atol=1e-4, rtol=1e-4), "output mismatch (f32)"
    assert jnp.allclose(u_new, u_ref, atol=1e-5, rtol=1e-5), "u mismatch"
    assert jnp.allclose(v_new, v_ref, atol=1e-5, rtol=1e-5), "v mismatch"

    # Eval mode (no power iteration) + auto tile selection.
    y_e, _, _ = spectral_norm_conv_forward(
        x, w_bar, bias, u0, v0, training=False, compute_dtype=jnp.float32)
    y_e_ref, _, _ = ref_forward(x, w_bar, bias, u0, v0, training=False)
    assert jnp.allclose(y_e, y_e_ref, atol=1e-4, rtol=1e-4), "eval mismatch"

    # bf16 operands (recommended on v6e/v7x), f32 accumulation / f32 SN math.
    y_bf, _, _ = spectral_norm_conv_forward(
        x, w_bar, bias, u0, v0, training=True, power_iterations=1,
        compute_dtype=jnp.bfloat16, tile_s=128)
    jax.block_until_ready(y_bf)
    assert jnp.allclose(y_bf, y_ref, atol=5e-2, rtol=5e-2), "bf16 mismatch"

    print("KERNEL_OK")
</pallas_src>

<mosaic_0001>
module attributes {stable_mosaic.version = 11 : i64} {
  func.func @_sn_kernel(%arg0: memref<8x36xf32, #tpu.memory_space<vmem>>, %arg1: memref<1x8xf32, #tpu.memory_space<vmem>>, %arg2: memref<1x36xf32, #tpu.memory_space<vmem>>, %arg3: memref<1x1xf32, #tpu.memory_space<vmem>>, %arg4: memref<1x8xf32, #tpu.memory_space<vmem>>, %arg5: memref<1x36xf32, #tpu.memory_space<vmem>>) attributes {dimension_semantics = [], scalar_prefetch = 0 : i64, scratch_operands = 0 : i64, tpu.core_type = #tpu.core_type<tc>} {
    %c0 = arith.constant 0 : index
    %c0_0 = arith.constant 0 : index
    %0 = vector.load %arg0[%c0, %c0_0] : memref<8x36xf32, #tpu.memory_space<vmem>>, vector<8x36xf32>
    %c0_1 = arith.constant 0 : index
    %c0_2 = arith.constant 0 : index
    %1 = vector.load %arg1[%c0_1, %c0_2] : memref<1x8xf32, #tpu.memory_space<vmem>>, vector<1x8xf32>
    %cst = arith.constant dense<0.000000e+00> : vector<1x36xf32>
    %2 = tpu.matmul %1, %0, %cst {dimension_numbers = #tpu.dot_dimension_numbers<[1], [0], [0], [1], [0, 0, 1, 1], [], []>} : vector<1x8xf32>, vector<8x36xf32>, vector<1x36xf32> -> vector<1x36xf32>
    %3 = arith.mulf %2, %2 : vector<1x36xf32>
    %4 = vector.shape_cast %3 : vector<1x36xf32> to vector<1x1x36xf32>
    %cst_3 = arith.constant dense<0.000000e+00> : vector<1xf32>
    %5 = vector.multi_reduction <add>, %4, %cst_3 [1, 2] : vector<1x1x36xf32> to vector<1xf32>
    %6 = vector.shape_cast %5 : vector<1xf32> to vector<1x1x1xf32>
    %7 = vector.extract %6[0, 0, 0] : f32 from vector<1x1x1xf32>
    %8 = math.sqrt %7 : f32
    %cst_4 = arith.constant 9.99999996E-13 : f32
    %9 = arith.addf %8, %cst_4 : f32
    %10 = vector.broadcast %9 : f32 to vector<1x36xf32>
    %11 = arith.divf %2, %10 : vector<1x36xf32>
    %12 = tpu.transpose %11, [1, 0] : vector<1x36xf32> -> vector<36x1xf32>
    %cst_5 = arith.constant dense<0.000000e+00> : vector<8x1xf32>
    %13 = tpu.matmul %0, %12, %cst_5 {dimension_numbers = #tpu.dot_dimension_numbers<[1], [0], [0], [1], [0, 0, 1, 1], [], []>} : vector<8x36xf32>, vector<36x1xf32>, vector<8x1xf32> -> vector<8x1xf32>
    %14 = tpu.transpose %13, [1, 0] : vector<8x1xf32> -> vector<1x8xf32>
    %15 = arith.mulf %13, %13 : vector<8x1xf32>
    %16 = vector.shape_cast %15 : vector<8x1xf32> to vector<1x8x1xf32>
    %cst_6 = arith.constant dense<0.000000e+00> : vector<1xf32>
    %17 = vector.multi_reduction <add>, %16, %cst_6 [1, 2] : vector<1x8x1xf32> to vector<1xf32>
    %18 = vector.shape_cast %17 : vector<1xf32> to vector<1x1x1xf32>
    %19 = vector.extract %18[0, 0, 0] : f32 from vector<1x1x1xf32>
    %20 = math.sqrt %19 : f32
    %cst_7 = arith.constant 9.99999996E-13 : f32
    %21 = arith.addf %20, %cst_7 : f32
    %22 = vector.broadcast %21 : f32 to vector<1x8xf32>
    %23 = arith.divf %14, %22 : vector<1x8xf32>
    %24 = tpu.transpose %11, [1, 0] : vector<1x36xf32> -> vector<36x1xf32>
    %cst_8 = arith.constant dense<0.000000e+00> : vector<8x1xf32>
    %25 = tpu.matmul %0, %24, %cst_8 {dimension_numbers = #tpu.dot_dimension_numbers<[1], [0], [0], [1], [0, 0, 1, 1], [], []>} : vector<8x36xf32>, vector<36x1xf32>, vector<8x1xf32> -> vector<8x1xf32>
    %26 = tpu.transpose %25, [1, 0] : vector<8x1xf32> -> vector<1x8xf32>
    %27 = arith.mulf %23, %26 : vector<1x8xf32>
    %cst_9 = arith.constant dense<0.000000e+00> : vector<1xf32>
    %28 = vector.multi_reduction <add>, %27, %cst_9 [1] : vector<1x8xf32> to vector<1xf32>
    %29 = vector.shape_cast %28 : vector<1xf32> to vector<1x1xf32>
    %cst_10 = arith.constant 1.000000e+00 : f32
    %30 = vector.broadcast %cst_10 : f32 to vector<1x1xf32>
    %31 = arith.divf %30, %29 : vector<1x1xf32>
    %c0_11 = arith.constant 0 : index
    %c0_12 = arith.constant 0 : index
    %32 = vector.load %arg3[%c0_11, %c0_12] : memref<1x1xf32, #tpu.memory_space<vmem>>, vector<1x1xf32>
    tpu.vector_store %arg3[%c0_11, %c0_12], %31 {strides = array<i32>} : memref<1x1xf32, #tpu.memory_space<vmem>>, vector<1x1xf32>,
    %c0_13 = arith.constant 0 : index
    %c0_14 = arith.constant 0 : index
    %33 = vector.load %arg4[%c0_13, %c0_14] : memref<1x8xf32, #tpu.memory_space<vmem>>, vector<1x8xf32>
    tpu.vector_store %arg4[%c0_13, %c0_14], %23 {strides = array<i32>} : memref<1x8xf32, #tpu.memory_space<vmem>>, vector<1x8xf32>,
    %c0_15 = arith.constant 0 : index
    %c0_16 = arith.constant 0 : index
    %34 = vector.load %arg5[%c0_15, %c0_16] : memref<1x36xf32, #tpu.memory_space<vmem>>, vector<1x36xf32>
    tpu.vector_store %arg5[%c0_15, %c0_16], %11 {strides = array<i32>} : memref<1x36xf32, #tpu.memory_space<vmem>>, vector<1x36xf32>,
    return
  }
}

</mosaic_0001>

<llo_original>
// kernel: tpu_custom_call.1
$region0: #{tpu_custom_call.1}
  #allocation0 [shape = 'u32[]', space=smem, size = 0x4, offset = 0x4, fixed_abs, tag = 'smem constant byte address 0x4 - core index']
  #allocation1 [shape = 'u32[144,128]{1,0:T(1,128)}', space=vmem, size = 0x12000, scoped, tag = 'internal scratch']
  %s0 = inlined_call_operand.hbm [shape: f32[8,36], index: 0, kind: input, shape index: {}]
  %s1 = inlined_call_operand.vmem [shape: f32[1,8], index: 1, kind: input, shape index: {}]
  %s2 = inlined_call_operand.vmem [shape: f32[1,36], index: 2, kind: input, shape index: {}]
  %s3 = inlined_call_operand.hbm [shape: f32[1,1], index: 3, kind: output, shape index: {0}]
  %s4 = inlined_call_operand.hbm [shape: f32[1,8], index: 4, kind: output, shape index: {1}]
  %s5 = inlined_call_operand.hbm [shape: f32[1,36], index: 5, kind: output, shape index: {2}]
  %6 = xla_tuple %s3, %s4, %s5
  %s7 = sld [smem:[#allocation0]]
  $region42: #{tpu_custom_call.1} parent=0
    _
  %s9 = ssub.s32 1, %s7
  %s10 = scalar_select 0, %s9, %s7
  $region1: #{tpu_custom_call.1} parent=0
    #allocation2 [shape = 'u8[4096]{0}', space=vmem, size = 0x1000, scoped, tag = 'input window, operand 0, single buffered']
    #allocation3 [shape = 's32[1]{0}', space=sflag, size = 0x4, scoped, tag = 'scoped memory for tpu_custom_call.1']
    #allocation4 [shape = 's32[1]{0}', space=sflag, size = 0x4, scoped, tag = 'scoped memory for tpu_custom_call.1']
    #allocation5 [shape = 'u8[512]{0}', space=vmem, size = 0x400, scoped, tag = 'output window, operand 0, single buffered']
    #allocation6 [shape = 'u8[512]{0}', space=vmem, size = 0x400, scoped, tag = 'output window, operand 1, single buffered']
    #allocation7 [shape = 's32[1]{0}', space=sflag, size = 0x4, scoped, tag = 'scoped memory for tpu_custom_call.1']
    #allocation8 [shape = 'u8[512]{0}', space=vmem, size = 0x400, scoped, tag = 'output window, operand 2, single buffered']
    %11 = vsyncpa [#allocation3], 0
    %12 = vsyncpa [#allocation4], 0
    %13 = vsyncpa [#allocation7], 0
    // Predicated region
    $region2: #{tpu_custom_call.1} parent=1 // pred_check
      _
    $region3: #{tpu_custom_call.1} parent=1 // pred_check_branch
      %15 = sbr.rel (0) target = $region5
    $region4: #{tpu_custom_call.1} parent=1 // pred_region
      %s17 = ssub.s32 128, 128
      %18 = vsyncadd [#allocation3], %s17
      %s20 = sshll.u32 [#allocation2], 4
      %s21 = int_to_ptr.vmem [resolvable:$true] %s20
      %23 = dma.hbm_to_vmem [thread:$0]  %s0, 128, %s21, [#allocation3]
    $region5: #{tpu_custom_call.1} parent=1 // pred_fallthru
      _
    // Predicated region
    $region6: #{tpu_custom_call.1} parent=1 // pred_check
      _
    $region7: #{tpu_custom_call.1} parent=1 // pred_check_branch
      %25 = sbr.rel (0) target = $region9
    $region8: #{tpu_custom_call.1} parent=1 // pred_region
      _
    $region9: #{tpu_custom_call.1} parent=1 // pred_fallthru
      _
    // Predicated region
    $region10: #{tpu_custom_call.1} parent=1 // pred_check
      _
    $region11: #{tpu_custom_call.1} parent=1 // pred_check_branch
      %27 = sbr.rel (0) target = $region13
    $region12: #{tpu_custom_call.1} parent=1 // pred_region
      _
    $region13: #{tpu_custom_call.1} parent=1 // pred_fallthru
      _
    // Predicated region
    $region14: #{tpu_custom_call.1} parent=1 // pred_check
      _
    $region15: #{tpu_custom_call.1} parent=1 // pred_check_branch
      %29 = sbr.rel (0) target = $region17
    $region16: #{tpu_custom_call.1} parent=1 // pred_region
      %30 = dma.done [#allocation3], 128
    $region17: #{tpu_custom_call.1} parent=1 // pred_fallthru
      _
    %v31 = vld [vmem:[#allocation2] sm:$0xff]
    %v32 = vld [vmem:[%s1] sm:$0x1]
    %vm33 = vcmask 64512
    %v35 = vsel %vm33, %v32, 0
    %37 = vmatprep.subr.mxu0 0.0
    %38 = vmatpush1.msra.mxu0 %v31
    %39 = vmatprep.subr.mxu0 0.0
    %40 = vmatpush1.msra.mxu0 0.0
    %41 = vmatprep.subr.mxu0 0.0
    %42 = vmatpush1.msra.mxu0 0.0
    %43 = vmatprep.subr.mxu0 0.0
    %44 = vmatpush1.msra.mxu0 0.0
    %45 = vmatprep.subr.mxu0 0.0
    %46 = vmatpush1.msra.mxu0 0.0
    %47 = vmatprep.subr.mxu0 0.0
    %48 = vmatpush1.msra.mxu0 0.0
    %49 = vmatprep.subr.mxu0 0.0
    %50 = vmatpush1.msra.mxu0 0.0
    %51 = vmatprep.subr.mxu0 0.0
    %52 = vmatpush1.msra.mxu0 0.0
    %53 = vmatprep.subr.mxu0 0.0
    %54 = vmatpush1.msra.mxu0 0.0
    %55 = vmatprep.subr.mxu0 0.0
    %56 = vmatpush1.msra.mxu0 0.0
    %57 = vmatprep.subr.mxu0 0.0
    %58 = vmatpush1.msra.mxu0 0.0
    %59 = vmatprep.subr.mxu0 0.0
    %60 = vmatpush1.msra.mxu0 0.0
    %61 = vmatprep.subr.mxu0 0.0
    %62 = vmatpush1.msra.mxu0 0.0
    %63 = vmatprep.subr.mxu0 0.0
    %64 = vmatpush1.msra.mxu0 0.0
    %65 = vmatprep.subr.mxu0 0.0
    %66 = vmatpush1.msra.mxu0 0.0
    %67 = vmatprep.subr.mxu0 0.0
    %68 = vmatpush1.msra.mxu0 0.0
    %69 = vmatprep.subr.mxu0 0.0
    %70 = vmatpush1.msra.mxu0 0.0
    %71 = vmatprep.subr.mxu0 0.0
    %72 = vmatpush1.msra.mxu0 0.0
    %73 = vmatprep.subr.mxu0 0.0
    %74 = vmatpush1.msra.mxu0 0.0
    %75 = vmatprep.subr.mxu0 0.0
    %76 = vmatpush1.msra.mxu0 0.0
    %77 = vmatprep.subr.mxu0 0.0
    %78 = vmatpush1.msra.mxu0 0.0
    %79 = vmatprep.subr.mxu0 0.0
    %80 = vmatpush1.msra.mxu0 0.0
    %81 = vmatprep.subr.mxu0 0.0
    %82 = vmatpush1.msra.mxu0 0.0
    %83 = vmatprep.subr.mxu0 0.0
    %84 = vmatpush1.msra.mxu0 0.0
    %85 = vmatprep.subr.mxu0 0.0
    %86 = vmatpush1.msra.mxu0 0.0
    %87 = vmatprep.subr.mxu0 0.0
    %88 = vmatpush1.msra.mxu0 0.0
    %89 = vmatprep.subr.mxu0 0.0
    %90 = vmatpush1.msra.mxu0 0.0
    %91 = vmatprep.subr.mxu0 0.0
    %92 = vmatpush1.msra.mxu0 0.0
    %93 = vmatprep.subr.mxu0 0.0
    %94 = vmatpush1.msra.mxu0 0.0
    %95 = vmatprep.subr.mxu0 0.0
    %96 = vmatpush1.msra.mxu0 0.0
    %97 = vmatprep.subr.mxu0 0.0
    %98 = vmatpush1.msra.mxu0 0.0
    %99 = vmatprep.subr.mxu0 0.0
    %100 = vmatpush1.msra.mxu0 0.0
    %101 = vmatprep.mubr.f32.mxu0 0.0
    %102 = vmatmul.mubr.f32.gmra.mrb[0].mxu0 %v35
    %v103 = vpop.f32.mrb[0].mxu0
    %v104 = vadd.f32 0.0, %v103
    %v105 = vpop.f32.mrb[0].mxu0
    %106 = vdwg.mxu0
    %v107 = vmul.f32 %v104, %v104
    %vm108 = vcmask 286720
    %v109 = vsel %vm108, %v107, 0.0
    %110 = vadd.xlane.f32.xlu0 %v109
    %v111 = vpop.xlane.xlu0 %110
    %v112 = vrot.slane %v111, 4
    %v113 = vadd.f32 %v111, %v112
    %v114 = vrot.slane %v113, 2
    %v115 = vadd.f32 %v113, %v114
    %v116 = vrot.slane %v115, 1
    %v117 = vadd.f32 %v115, %v116
    %s118 = vtos %v117
    %v119 = vstv %s118
    %v120 = vrsqrt.pop %v119
    %v121 = vmul.f32 %v119, %v120
    %vm122 = vcmp.eq.f32.partialorder %v119, inf
    %v123 = vsel %vm122, %v119, %v121
    %vm124 = vcmp.eq.f32.partialorder %v119, 0.0
    %v125 = vand.u32 %v119, 2147483648
    %v126 = vsel %vm124, %v125, %v123
    %s127 = vtos %v126
    %s128 = sadd.f32 %s127, 1e-12
    %v129 = vstv %s128
    %v130 = vrcp.pop %v129
    %v131 = vmul.f32 %v104, %v130
    %v132 = vlaneseq
    %v133 = vshrl.u32 %v132, 7
    %v134 = vsub.s32 0, %v133
    %v135 = vrot.slane %v131, %v134
    %v136 = vmul.f32 %v31, %v135
    %vm137 = vcmask 293888
    %v138 = vsel %vm137, %v136, 0.0
    %139 = vadd.xlane.f32.xlu0 %v138
    %v140 = vpop.xlane.xlu0 %139
    %141 = vxpose.xlu0.b32.start [1/16] %v140, 128
    %142 = vxpose.xlu0.b32.cont [2/16] 0.0, 128
    %143 = vxpose.xlu0.b32.cont [3/16] 0.0, 128
    %144 = vxpose.xlu0.b32.cont [4/16] 0.0, 128
    %145 = vxpose.xlu0.b32.cont [5/16] 0.0, 128
    %146 = vxpose.xlu0.b32.cont [6/16] 0.0, 128
    %147 = vxpose.xlu0.b32.cont [7/16] 0.0, 128
    %148 = vxpose.xlu0.b32.cont [8/16] 0.0, 128
    %149 = vxpose.xlu0.b32.cont [9/16] 0.0, 128
    %150 = vxpose.xlu0.b32.cont [10/16] 0.0, 128
    %151 = vxpose.xlu0.b32.cont [11/16] 0.0, 128
    %152 = vxpose.xlu0.b32.cont [12/16] 0.0, 128
    %153 = vxpose.xlu0.b32.cont [13/16] 0.0, 128
    %154 = vxpose.xlu0.b32.cont [14/16] 0.0, 128
    %155 = vxpose.xlu0.b32.cont [15/16] 0.0, 128
    %156 = vxpose.xlu0.b32.end [16/16] 0.0, 128
    %v157 = vpop.trf.xlu0
    %v158 = vpop.trf.xlu0
    %v159 = vpop.trf.xlu0
    %v160 = vpop.trf.xlu0
    %v161 = vpop.trf.xlu0
    %v162 = vpop.trf.xlu0
    %v163 = vpop.trf.xlu0
    %v164 = vpop.trf.xlu0
    %v165 = vpop.trf.xlu0
    %v166 = vpop.trf.xlu0
    %v167 = vpop.trf.xlu0
    %v168 = vpop.trf.xlu0
    %v169 = vpop.trf.xlu0
    %v170 = vpop.trf.xlu0
    %v171 = vpop.trf.xlu0
    %v172 = vpop.trf.xlu0
    %v173 = vmul.f32 %v140, %v140
    %vm174 = vcmask 7168
    %v175 = vsel %vm174, %v173, 0.0
    %176 = vadd.xlane.f32.xlu0 %v175
    %v177 = vpop.xlane.xlu0 %176
    %v178 = vrot.slane %v177, 4
    %v179 = vadd.f32 %v177, %v178
    %v180 = vrot.slane %v179, 2
    %v181 = vadd.f32 %v179, %v180
    %v182 = vrot.slane %v181, 1
    %v183 = vadd.f32 %v181, %v182
    %s184 = vtos %v183
    %v185 = vstv %s184
    %v186 = vrsqrt.pop %v185
    %v187 = vmul.f32 %v185, %v186
    %vm188 = vcmp.eq.f32.partialorder %v185, inf
    %v189 = vsel %vm188, %v185, %v187
    %vm190 = vcmp.eq.f32.partialorder %v185, 0.0
    %v191 = vand.u32 %v185, 2147483648
    %v192 = vsel %vm190, %v191, %v189
    %s193 = vtos %v192
    %s194 = sadd.f32 %s193, 1e-12
    %v195 = vstv %s194
    %v196 = vrcp.pop %v195
    %v197 = vmul.f32 %v157, %v196
    %v198 = vmul.f32 %v197, %v157
    %vm199 = vcmask 57344
    %v200 = vsel %vm199, %v198, 0.0
    %201 = vadd.xlane.f32.xlu0 %v200
    %v202 = vpop.xlane.xlu0 %201
    %v203 = vrcp.pop %v202
    %v204 = vmul.f32 1.0, %v203
    %vm205 = vcmask 0
    %206 = vst.msk [vmem:[#allocation5] sm:$0x1] %vm205, %v204
    %207 = vst.msk [vmem:[#allocation6] sm:$0x1] %vm199, %v197
    %208 = vst.msk [vmem:[#allocation8] sm:$0x1] %vm108, %v131
    // Predicated region
    $region18: #{tpu_custom_call.1} parent=1 // pred_check
      _
    $region19: #{tpu_custom_call.1} parent=1 // pred_check_branch
      %210 = sbr.rel (0) target = $region21
    $region20: #{tpu_custom_call.1} parent=1 // pred_region
      %s212 = ssub.s32 16, 16
      %213 = vsyncadd [#allocation4], %s212
      %s215 = sshll.u32 [#allocation5], 4
      %s216 = int_to_ptr.vmem [resolvable:$true] %s215
      %218 = dma.vmem_to_hbm [thread:$0]  %s216, 16, %s3, [#allocation4]
    $region21: #{tpu_custom_call.1} parent=1 // pred_fallthru
      _
    // Predicated region
    $region22: #{tpu_custom_call.1} parent=1 // pred_check
      _
    $region23: #{tpu_custom_call.1} parent=1 // pred_check_branch
      %220 = sbr.rel (0) target = $region25
    $region24: #{tpu_custom_call.1} parent=1 // pred_region
      %s222 = ssub.s32 16, 16
      %223 = vsyncadd [#allocation7], %s222
      %s225 = sshll.u32 [#allocation6], 4
      %s226 = int_to_ptr.vmem [resolvable:$true] %s225
      %228 = dma.vmem_to_hbm [thread:$0]  %s226, 16, %s4, [#allocation7]
    $region25: #{tpu_custom_call.1} parent=1 // pred_fallthru
      _
    // Predicated region
    $region26: #{tpu_custom_call.1} parent=1 // pred_check
      _
    $region27: #{tpu_custom_call.1} parent=1 // pred_check_branch
      %230 = sbr.rel (0) target = $region29
    $region28: #{tpu_custom_call.1} parent=1 // pred_region
      %s232 = ssub.s32 16, 16
      %233 = vsyncadd [#allocation7], %s232
      %s235 = sshll.u32 [#allocation8], 4
      %s236 = int_to_ptr.vmem [resolvable:$true] %s235
      %238 = dma.vmem_to_hbm [thread:$0]  %s236, 16, %s5, [#allocation7]
    $region29: #{tpu_custom_call.1} parent=1 // pred_fallthru
      _
    // Predicated region
    $region30: #{tpu_custom_call.1} parent=1 // pred_check
      _
    $region31: #{tpu_custom_call.1} parent=1 // pred_check_branch
      %240 = sbr.rel (0) target = $region33
    $region32: #{tpu_custom_call.1} parent=1 // pred_region
      %241 = dma.done [#allocation4], 16
    $region33: #{tpu_custom_call.1} parent=1 // pred_fallthru
      _
    // Predicated region
    $region34: #{tpu_custom_call.1} parent=1 // pred_check
      _
    $region35: #{tpu_custom_call.1} parent=1 // pred_check_branch
      %243 = sbr.rel (0) target = $region37
    $region36: #{tpu_custom_call.1} parent=1 // pred_region
      %244 = dma.done [#allocation7], 16
    $region37: #{tpu_custom_call.1} parent=1 // pred_fallthru
      _
    // Predicated region
    $region38: #{tpu_custom_call.1} parent=1 // pred_check
      _
    $region39: #{tpu_custom_call.1} parent=1 // pred_check_branch
      %246 = sbr.rel (0) target = $region41
    $region40: #{tpu_custom_call.1} parent=1 // pred_region
      %247 = dma.done [#allocation7], 16
    $region41: #{tpu_custom_call.1} parent=1 // pred_fallthru
      _
    %248 = vsyncpa [#allocation3], 1
    %249 = vsyncpa [#allocation4], 1
    %250 = vsyncpa [#allocation7], 1

</llo_original>
